<compile_context>
chip_gen: v6e
topology: v6e:2x2x1
jax: 0.10.0
libtpu: 0.0.40
codegen_flags: <defaults>
</compile_context>

<pallas_src>
import numpy as np

import jax
import jax.numpy as jnp
from jax.experimental import pallas as pl
from jax.experimental.pallas import tpu as pltpu

EXAM_WEIGHTS = [
    0.0736196319, 0.2346625767, 0.0782208589, 0.06257668712, 0.1042944785,
    0.06257668712, 0.1042944785, 0.1877300613, 0.09202453988,
]

# Pre-normalized weights (w / sum(w)), computed once in float64 for accuracy.
_W_NORM = (np.asarray(EXAM_WEIGHTS, dtype=np.float64)
           / np.asarray(EXAM_WEIGHTS, dtype=np.float64).sum()).astype(np.float32)


def _rsna_loss_kernel(pred_ref, label_ref, wn_ref, out_ref):
    """pred_ref/label_ref: (1, 9) row-0 tiles; wn_ref: (1, 9) normalized weights."""
    p = pred_ref[...]          # (1, 9) predictions in (0, 1)
    y = label_ref[...]         # (1, 9) binary labels
    wn = wn_ref[...]           # (1, 9) weights already divided by sum(weights)

    # torch.nn.BCELoss clamps log terms at -100 for numerical safety.
    log_p = jnp.maximum(jnp.log(p), -100.0)
    log_1mp = jnp.maximum(jnp.log(1.0 - p), -100.0)
    bce = -(y * log_p + (1.0 - y) * log_1mp)           # (1, 9)

    # Weighted row sum; normalization is folded into wn, so no divide needed.
    out_ref[...] = jnp.sum(bce * wn, axis=1, keepdims=True)   # (1, 1)


def rsna_loss(predicted, label):
    """predicted, label: (B, 9) float32. Returns scalar float32 loss."""
    predicted = predicted.astype(jnp.float32)
    label = label.astype(jnp.float32)
    _, c = predicted.shape

    # Only row 0 feeds the PyTorch metric ([0] indexing) -> slice before the
    # kernel so the pallas_call only moves / computes 9 elements per input.
    pred0 = predicted[0:1, :]                           # (1, 9)
    label0 = label[0:1, :]                              # (1, 9)
    w_norm = jnp.asarray(_W_NORM, dtype=jnp.float32).reshape(1, c)

    out = pl.pallas_call(
        _rsna_loss_kernel,
        out_shape=jax.ShapeDtypeStruct((1, 1), jnp.float32),
        # Grid-less call: whole (1, 9) arrays resident in VMEM, no pipelining,
        # no double-buffering.
        in_specs=[
            pl.BlockSpec(memory_space=pltpu.MemorySpace.VMEM),
            pl.BlockSpec(memory_space=pltpu.MemorySpace.VMEM),
            pl.BlockSpec(memory_space=pltpu.MemorySpace.VMEM),
        ],
        out_specs=pl.BlockSpec(memory_space=pltpu.MemorySpace.VMEM),
    )(pred0, label0, w_norm)
    return out[0, 0]


def _reference(predicted, label):
    """Pure-JAX reference matching the PyTorch rsna_metric (original op order)."""
    w = jnp.asarray(EXAM_WEIGHTS, dtype=jnp.float32).reshape(1, -1)
    p = jnp.clip(predicted, 1e-38, 1.0)
    log_p = jnp.maximum(jnp.log(p), -100.0)
    log_1mp = jnp.maximum(jnp.log(jnp.clip(1.0 - predicted, 1e-38, 1.0)), -100.0)
    bce = -(label * log_p + (1.0 - label) * log_1mp)
    exam_loss = jnp.sum(bce * w, axis=1)[0]
    return exam_loss / jnp.sum(w)


if __name__ == "__main__":
    key = jax.random.PRNGKey(0)
    k1, k2 = jax.random.split(key)

    B, C = 2, 9  # batch of 2 exams, 9 exam-target columns
    logits = jax.random.normal(k1, (B, C), dtype=jnp.float32)
    predicted = jax.nn.sigmoid(logits)                                  # in (0, 1)
    label = (jax.random.uniform(k2, (B, C)) > 0.5).astype(jnp.float32)  # binary

    loss = rsna_loss(predicted, label)
    loss = jax.block_until_ready(loss)

    ref = _reference(predicted, label)
    assert jnp.allclose(loss, ref, rtol=1e-5, atol=1e-6), (loss, ref)

    print("KERNEL_OK")
</pallas_src>

<mosaic_0001>
module attributes {stable_mosaic.version = 11 : i64} {
  func.func @_rsna_loss_kernel(%arg0: memref<1x9xf32, #tpu.memory_space<vmem>>, %arg1: memref<1x9xf32, #tpu.memory_space<vmem>>, %arg2: memref<1x9xf32, #tpu.memory_space<vmem>>, %arg3: memref<1x1xf32, #tpu.memory_space<vmem>>) attributes {dimension_semantics = [], scalar_prefetch = 0 : i64, scratch_operands = 0 : i64, tpu.core_type = #tpu.core_type<tc>} {
    %c0 = arith.constant 0 : index
    %c0_0 = arith.constant 0 : index
    %0 = vector.load %arg0[%c0, %c0_0] : memref<1x9xf32, #tpu.memory_space<vmem>>, vector<1x9xf32>
    %c0_1 = arith.constant 0 : index
    %c0_2 = arith.constant 0 : index
    %1 = vector.load %arg1[%c0_1, %c0_2] : memref<1x9xf32, #tpu.memory_space<vmem>>, vector<1x9xf32>
    %c0_3 = arith.constant 0 : index
    %c0_4 = arith.constant 0 : index
    %2 = vector.load %arg2[%c0_3, %c0_4] : memref<1x9xf32, #tpu.memory_space<vmem>>, vector<1x9xf32>
    %3 = math.log %0 : vector<1x9xf32>
    %cst = arith.constant -1.000000e+02 : f32
    %4 = vector.broadcast %cst : f32 to vector<1x9xf32>
    %5 = arith.maximumf %3, %4 : vector<1x9xf32>
    %cst_5 = arith.constant 1.000000e+00 : f32
    %6 = vector.broadcast %cst_5 : f32 to vector<1x9xf32>
    %7 = arith.subf %6, %0 : vector<1x9xf32>
    %8 = math.log %7 : vector<1x9xf32>
    %cst_6 = arith.constant -1.000000e+02 : f32
    %9 = vector.broadcast %cst_6 : f32 to vector<1x9xf32>
    %10 = arith.maximumf %8, %9 : vector<1x9xf32>
    %11 = arith.mulf %1, %5 : vector<1x9xf32>
    %cst_7 = arith.constant 1.000000e+00 : f32
    %12 = vector.broadcast %cst_7 : f32 to vector<1x9xf32>
    %13 = arith.subf %12, %1 : vector<1x9xf32>
    %14 = arith.mulf %13, %10 : vector<1x9xf32>
    %15 = arith.addf %11, %14 : vector<1x9xf32>
    %cst_8 = arith.constant 0.000000e+00 : f32
    %16 = vector.broadcast %cst_8 : f32 to vector<1x9xf32>
    %17 = arith.subf %16, %15 : vector<1x9xf32>
    %18 = arith.mulf %17, %2 : vector<1x9xf32>
    %cst_9 = arith.constant dense<0.000000e+00> : vector<1xf32>
    %19 = vector.multi_reduction <add>, %18, %cst_9 [1] : vector<1x9xf32> to vector<1xf32>
    %20 = vector.shape_cast %19 : vector<1xf32> to vector<1x1xf32>
    %c0_10 = arith.constant 0 : index
    %c0_11 = arith.constant 0 : index
    %21 = vector.load %arg3[%c0_10, %c0_11] : memref<1x1xf32, #tpu.memory_space<vmem>>, vector<1x1xf32>
    tpu.vector_store %arg3[%c0_10, %c0_11], %20 {strides = array<i32>} : memref<1x1xf32, #tpu.memory_space<vmem>>, vector<1x1xf32>,
    return
  }
}

</mosaic_0001>

<llo_original>
// kernel: tpu_custom_call.1
$region0: #{tpu_custom_call.1}
  #allocation0 [shape = 'u32[]', space=smem, size = 0x4, offset = 0x4, fixed_abs, tag = 'smem constant byte address 0x4 - core index']
  #allocation1 [shape = 'u32[144,128]{1,0:T(1,128)}', space=vmem, size = 0x12000, scoped, tag = 'internal scratch']
  %s0 = inlined_call_operand.hbm [shape: f32[1,9], index: 0, kind: input, shape index: {}]
  %s1 = inlined_call_operand.vmem [shape: f32[1,9], index: 1, kind: input, shape index: {}]
  %s2 = inlined_call_operand.vmem [shape: f32[1,9], index: 2, kind: input, shape index: {}]
  %s3 = inlined_call_operand.hbm [shape: f32[1,1], index: 3, kind: output, shape index: {}]
  %s4 = sld [smem:[#allocation0]]
  $region26: #{tpu_custom_call.1} parent=0
    _
  %s6 = ssub.s32 1, %s4
  %s7 = scalar_select 0, %s6, %s4
  $region1: #{tpu_custom_call.1} parent=0
    #allocation2 [shape = 'u8[512]{0}', space=vmem, size = 0x400, scoped, tag = 'input window, operand 0, single buffered']
    #allocation3 [shape = 's32[1]{0}', space=sflag, size = 0x4, scoped, tag = 'scoped memory for tpu_custom_call.1']
    #allocation4 [shape = 's32[1]{0}', space=sflag, size = 0x4, scoped, tag = 'scoped memory for tpu_custom_call.1']
    #allocation5 [shape = 'u8[512]{0}', space=vmem, size = 0x400, scoped, tag = 'output window, operand 0, single buffered']
    %8 = vsyncpa [#allocation3], 0
    %9 = vsyncpa [#allocation4], 0
    // Predicated region
    $region2: #{tpu_custom_call.1} parent=1 // pred_check
      _
    $region3: #{tpu_custom_call.1} parent=1 // pred_check_branch
      %11 = sbr.rel (0) target = $region5
    $region4: #{tpu_custom_call.1} parent=1 // pred_region
      %s13 = ssub.s32 16, 16
      %14 = vsyncadd [#allocation3], %s13
      %s16 = sshll.u32 [#allocation2], 4
      %s17 = int_to_ptr.vmem [resolvable:$true] %s16
      %19 = dma.hbm_to_vmem [thread:$0]  %s0, 16, %s17, [#allocation3]
    $region5: #{tpu_custom_call.1} parent=1 // pred_fallthru
      _
    // Predicated region
    $region6: #{tpu_custom_call.1} parent=1 // pred_check
      _
    $region7: #{tpu_custom_call.1} parent=1 // pred_check_branch
      %21 = sbr.rel (0) target = $region9
    $region8: #{tpu_custom_call.1} parent=1 // pred_region
      _
    $region9: #{tpu_custom_call.1} parent=1 // pred_fallthru
      _
    // Predicated region
    $region10: #{tpu_custom_call.1} parent=1 // pred_check
      _
    $region11: #{tpu_custom_call.1} parent=1 // pred_check_branch
      %23 = sbr.rel (0) target = $region13
    $region12: #{tpu_custom_call.1} parent=1 // pred_region
      _
    $region13: #{tpu_custom_call.1} parent=1 // pred_fallthru
      _
    // Predicated region
    $region14: #{tpu_custom_call.1} parent=1 // pred_check
      _
    $region15: #{tpu_custom_call.1} parent=1 // pred_check_branch
      %25 = sbr.rel (0) target = $region17
    $region16: #{tpu_custom_call.1} parent=1 // pred_region
      %26 = dma.done [#allocation3], 16
    $region17: #{tpu_custom_call.1} parent=1 // pred_fallthru
      _
    %v27 = vld [vmem:[#allocation2] sm:$0x1]
    %v28 = vld [vmem:[%s1] sm:$0x1]
    %v29 = vld [vmem:[%s2] sm:$0x1]
    %v30 = vlog2.pop %v27
    %v31 = vmul.f32 %v30, 0.6931472
    %v32 = vmax.f32 %v31, -100.0
    %v33 = vsub.f32 1.0, %v27
    %v34 = vlog2.pop %v33
    %v35 = vmul.f32 %v34, 0.6931472
    %v36 = vmax.f32 %v35, -100.0
    %v37 = vmul.f32 %v28, %v32
    %v38 = vsub.f32 1.0, %v28
    %v39 = vmul.f32 %v38, %v36
    %v40 = vadd.f32 %v37, %v39
    %v41 = vsub.f32 0.0, %v40
    %v42 = vmul.f32 %v41, %v29
    %vm43 = vcmask 65536
    %v44 = vsel %vm43, %v42, 0.0
    %45 = vadd.xlane.f32.xlu0 %v44
    %v46 = vpop.xlane.xlu0 %45
    %vm47 = vcmask 0
    %48 = vst.msk [vmem:[#allocation5] sm:$0x1] %vm47, %v46
    // Predicated region
    $region18: #{tpu_custom_call.1} parent=1 // pred_check
      _
    $region19: #{tpu_custom_call.1} parent=1 // pred_check_branch
      %50 = sbr.rel (0) target = $region21
    $region20: #{tpu_custom_call.1} parent=1 // pred_region
      %s52 = ssub.s32 16, 16
      %53 = vsyncadd [#allocation4], %s52
      %s55 = sshll.u32 [#allocation5], 4
      %s56 = int_to_ptr.vmem [resolvable:$true] %s55
      %58 = dma.vmem_to_hbm [thread:$0]  %s56, 16, %s3, [#allocation4]
    $region21: #{tpu_custom_call.1} parent=1 // pred_fallthru
      _
    // Predicated region
    $region22: #{tpu_custom_call.1} parent=1 // pred_check
      _
    $region23: #{tpu_custom_call.1} parent=1 // pred_check_branch
      %60 = sbr.rel (0) target = $region25
    $region24: #{tpu_custom_call.1} parent=1 // pred_region
      %61 = dma.done [#allocation4], 16
    $region25: #{tpu_custom_call.1} parent=1 // pred_fallthru
      _
    %62 = vsyncpa [#allocation3], 1
    %63 = vsyncpa [#allocation4], 1

</llo_original>
